<compile_context>
chip_gen: v7x
topology: tpu7x:2x2x1
jax: 0.10.0
libtpu: 0.0.40
codegen_flags: <defaults>
</compile_context>

<pallas_src>
import math

import jax
import jax.numpy as jnp
from jax.experimental import pallas as pl
from jax.experimental.pallas import tpu as pltpu


def _same_pad_amounts(in_h, in_w, kernel_size, stride):
    """TF 'SAME' padding amounts, matching the PyTorch module's math.

    Note: as in the original module, index 0 of (kernel_size, stride) pairs
    with width and index 1 with height.
    """
    out_w = math.ceil(float(in_w) / float(stride[0]))
    out_h = math.ceil(float(in_h) / float(stride[1]))
    pad_along_width = max((out_w - 1) * stride[0] + kernel_size[0] - in_w, 0)
    pad_along_height = max((out_h - 1) * stride[1] + kernel_size[1] - in_h, 0)
    pad_left = pad_along_width // 2
    pad_top = pad_along_height // 2
    pad_right = pad_along_width - pad_left
    pad_bottom = pad_along_height - pad_top
    return pad_top, pad_bottom, pad_left, pad_right


def _make_pad_kernel(in_h, in_w, pad_top, pad_bottom, pad_left, pad_right):
    wp = in_w + pad_left + pad_right

    def kernel(x_ref, o_ref):
        r = x_ref.shape[0]          # static row-block size
        dt = o_ref.dtype

        # --- Border rows (full output width): top and bottom strips only.
        if pad_top:
            o_ref[:, pl.ds(0, pad_top), :] = jnp.zeros((r, pad_top, wp), dt)
        if pad_bottom:
            o_ref[:, pl.ds(pad_top + in_h, pad_bottom), :] = jnp.zeros(
                (r, pad_bottom, wp), dt)

        # --- Border columns within the interior row span: left/right strips.
        if pad_left:
            o_ref[:, pl.ds(pad_top, in_h), pl.ds(0, pad_left)] = jnp.zeros(
                (r, in_h, pad_left), dt)
        if pad_right:
            o_ref[:, pl.ds(pad_top, in_h), pl.ds(pad_left + in_w, pad_right)] = (
                jnp.zeros((r, in_h, pad_right), dt))

        # --- Interior: single direct store of the input tile.  No concat, no
        # whole-tile temporary, no zero-fill-then-overwrite of the interior.
        o_ref[:, pl.ds(pad_top, in_h), pl.ds(pad_left, in_w)] = (
            x_ref[...].astype(dt))

    return kernel


def _round_up(x, m):
    return ((x + m - 1) // m) * m


def _sublane_multiple(dtype):
    # Packed sub-32-bit dtypes stack along sublanes: 8 rows (4B), 16 (2B),
    # 32 (1B) per vreg sublane group.
    itemsize = jnp.dtype(dtype).itemsize
    return max(8, 32 // max(1, itemsize))


def _padded_row_bytes(h, w, dtype):
    """VMEM bytes of one (1, h, w) slice after (sublane, 128-lane) padding."""
    sub = _sublane_multiple(dtype)
    return _round_up(h, sub) * _round_up(w, 128) * jnp.dtype(dtype).itemsize


def _default_vmem_budget_bytes():
    """Budget for the double-buffered in+out tile pair (layout-padded).

    ~1/8 of physical VMEM, clamped to [4 MiB, 16 MiB]:
      v5e/v6e (128 MiB physical) -> 16 MiB; v7x (64 MiB per TC) -> 8 MiB.
    """
    try:
        cap = int(pltpu.get_tpu_info().vmem_capacity_bytes)
    except Exception:
        return 8 << 20
    return int(max(4 << 20, min(16 << 20, cap // 8)))


def same_pad_2d(x, kernel_size=(3, 3), stride=(1, 1), *, block_rows=None,
                vmem_budget_bytes=None):
    """Pallas implementation of SamePad2d.forward for NCHW input `x`."""
    b, c, h, w = x.shape
    pad_top, pad_bottom, pad_left, pad_right = _same_pad_amounts(
        h, w, kernel_size, stride)
    hp = h + pad_top + pad_bottom
    wp = w + pad_left + pad_right

    n_rows = b * c
    x_flat = x.reshape(n_rows, h, w)  # contiguous reshape: no data movement

    if vmem_budget_bytes is None:
        vmem_budget_bytes = _default_vmem_budget_bytes()

    # Layout-padded per-row VMEM cost, double-buffered input + output tiles.
    in_row = _padded_row_bytes(h, w, x.dtype)
    out_row = _padded_row_bytes(hp, wp, x.dtype)
    per_row_db = 2 * (in_row + out_row)

    if block_rows is None:
        block_rows = max(1, vmem_budget_bytes // per_row_db)
    block_rows = int(max(1, min(block_rows, n_rows)))

    # cdiv grid with a ragged last tile (Pallas clamps/discards out-of-bounds
    # rows) -> no perf cliff when b*c is prime / has only small factors.
    grid = (pl.cdiv(n_rows, block_rows),)

    # Explicit VMEM limit sized to the real (layout-padded, double-buffered)
    # footprint plus headroom, so the block choice is not at the mercy of the
    # per-generation scoped default (16 MiB v5e / 32 MiB v6e, v7x).
    footprint = block_rows * per_row_db
    vmem_limit = int(min(64 << 20,
                         max(4 << 20, footprint + footprint // 4 + (1 << 20))))

    bytes_accessed = (n_rows * h * w + n_rows * hp * wp) * x.dtype.itemsize

    out_flat = pl.pallas_call(
        _make_pad_kernel(h, w, pad_top, pad_bottom, pad_left, pad_right),
        out_shape=jax.ShapeDtypeStruct((n_rows, hp, wp), x.dtype),
        grid=grid,
        in_specs=[pl.BlockSpec((block_rows, h, w), lambda i: (i, 0, 0))],
        out_specs=pl.BlockSpec((block_rows, hp, wp), lambda i: (i, 0, 0)),
        compiler_params=pltpu.CompilerParams(
            dimension_semantics=("parallel",),
            vmem_limit_bytes=vmem_limit,
        ),
        cost_estimate=pl.CostEstimate(
            flops=0, transcendentals=0, bytes_accessed=bytes_accessed),
    )(x_flat)

    return out_flat.reshape(b, c, hp, wp)


if __name__ == "__main__":
    key = jax.random.PRNGKey(0)
    # Small NCHW input, matching the module's expected conv-style input.
    x = jax.random.normal(key, (2, 4, 16, 16), dtype=jnp.float32)

    # Case 1: k=3, s=1 (symmetric 1px pad).  Force block_rows=3 so the cdiv
    # grid has several steps and a ragged last tile (n_rows=8 -> 3+3+2), which
    # exercises the double-buffered pipeline and the out-of-bounds clamping.
    out = same_pad_2d(x, kernel_size=(3, 3), stride=(1, 1), block_rows=3)
    out = jax.block_until_ready(out)
    pt, pb, plft, prt = _same_pad_amounts(16, 16, (3, 3), (1, 1))
    ref = jnp.pad(x, ((0, 0), (0, 0), (pt, pb), (plft, prt)))
    assert out.shape == ref.shape, (out.shape, ref.shape)
    assert jnp.allclose(out, ref), "mismatch vs reference padding (k=3, s=1)"

    # Case 2: k=3, s=2 (asymmetric pad: 0 top/left, 1 bottom/right), default
    # VMEM-budgeted block choice.
    out2 = same_pad_2d(x, kernel_size=(3, 3), stride=(2, 2))
    out2 = jax.block_until_ready(out2)
    pt2, pb2, pl2_, pr2 = _same_pad_amounts(16, 16, (3, 3), (2, 2))
    ref2 = jnp.pad(x, ((0, 0), (0, 0), (pt2, pb2), (pl2_, pr2)))
    assert out2.shape == ref2.shape, (out2.shape, ref2.shape)
    assert jnp.allclose(out2, ref2), "mismatch vs reference padding (k=3, s=2)"

    print("KERNEL_OK")
</pallas_src>

<mosaic_0001>
module attributes {stable_mosaic.version = 11 : i64} {
  func.func @kernel(%arg0: i32, %arg1: memref<3x16x16xf32, #tpu.memory_space<vmem>>, %arg2: memref<3x18x18xf32, #tpu.memory_space<vmem>>) attributes {dimension_semantics = [#tpu.dimension_semantics<parallel>], iteration_bounds = array<i64: 3>, scalar_prefetch = 0 : i64, scratch_operands = 0 : i64, tpu.core_type = #tpu.core_type<tc>, window_params = [{transform_indices = @transform_0, window_bounds = array<i64: 3, 16, 16>}, {transform_indices = @transform_1, window_bounds = array<i64: 3, 18, 18>}]} {
    %cst = arith.constant 0.000000e+00 : f32
    %0 = vector.broadcast %cst : f32 to vector<3x1x18xf32>
    %c0 = arith.constant 0 : index
    %c0_0 = arith.constant 0 : index
    %c0_1 = arith.constant 0 : index
    %1 = vector.load %arg2[%c0, %c0_0, %c0_1] : memref<3x18x18xf32, #tpu.memory_space<vmem>>, vector<3x1x18xf32>
    tpu.vector_store %arg2[%c0, %c0_0, %c0_1], %0 {strides = array<i32>} : memref<3x18x18xf32, #tpu.memory_space<vmem>>, vector<3x1x18xf32>,
    %cst_2 = arith.constant 0.000000e+00 : f32
    %2 = vector.broadcast %cst_2 : f32 to vector<3x1x18xf32>
    %c0_3 = arith.constant 0 : index
    %c17 = arith.constant 17 : index
    %c0_4 = arith.constant 0 : index
    %3 = vector.load %arg2[%c0_3, %c17, %c0_4] : memref<3x18x18xf32, #tpu.memory_space<vmem>>, vector<3x1x18xf32>
    tpu.vector_store %arg2[%c0_3, %c17, %c0_4], %2 {strides = array<i32>} : memref<3x18x18xf32, #tpu.memory_space<vmem>>, vector<3x1x18xf32>,
    %cst_5 = arith.constant 0.000000e+00 : f32
    %4 = vector.broadcast %cst_5 : f32 to vector<3x16x1xf32>
    %c0_6 = arith.constant 0 : index
    %c1 = arith.constant 1 : index
    %c0_7 = arith.constant 0 : index
    %5 = vector.load %arg2[%c0_6, %c1, %c0_7] : memref<3x18x18xf32, #tpu.memory_space<vmem>>, vector<3x16x1xf32>
    tpu.vector_store %arg2[%c0_6, %c1, %c0_7], %4 {strides = array<i32>} : memref<3x18x18xf32, #tpu.memory_space<vmem>>, vector<3x16x1xf32>,
    %cst_8 = arith.constant 0.000000e+00 : f32
    %6 = vector.broadcast %cst_8 : f32 to vector<3x16x1xf32>
    %c0_9 = arith.constant 0 : index
    %c1_10 = arith.constant 1 : index
    %c17_11 = arith.constant 17 : index
    %7 = vector.load %arg2[%c0_9, %c1_10, %c17_11] : memref<3x18x18xf32, #tpu.memory_space<vmem>>, vector<3x16x1xf32>
    tpu.vector_store %arg2[%c0_9, %c1_10, %c17_11], %6 {strides = array<i32>} : memref<3x18x18xf32, #tpu.memory_space<vmem>>, vector<3x16x1xf32>,
    %c0_12 = arith.constant 0 : index
    %c0_13 = arith.constant 0 : index
    %c0_14 = arith.constant 0 : index
    %8 = vector.load %arg1[%c0_12, %c0_13, %c0_14] : memref<3x16x16xf32, #tpu.memory_space<vmem>>, vector<3x16x16xf32>
    %c0_15 = arith.constant 0 : index
    %c1_16 = arith.constant 1 : index
    %c1_17 = arith.constant 1 : index
    %9 = vector.load %arg2[%c0_15, %c1_16, %c1_17] : memref<3x18x18xf32, #tpu.memory_space<vmem>>, vector<3x16x16xf32>
    tpu.vector_store %arg2[%c0_15, %c1_16, %c1_17], %8 {strides = array<i32>} : memref<3x18x18xf32, #tpu.memory_space<vmem>>, vector<3x16x16xf32>,
    return
  }
  func.func @transform_0(%arg0: i32) -> (i32, i32, i32) {
    %c0_i32 = arith.constant 0 : i32
    %c0_i32_0 = arith.constant 0 : i32
    %c0_i32_1 = arith.constant 0 : i32
    return %arg0, %c0_i32, %c0_i32_0 : i32, i32, i32
  }
  func.func @transform_1(%arg0: i32) -> (i32, i32, i32) {
    %c0_i32 = arith.constant 0 : i32
    %c0_i32_0 = arith.constant 0 : i32
    %c0_i32_1 = arith.constant 0 : i32
    return %arg0, %c0_i32, %c0_i32_0 : i32, i32, i32
  }
}

</mosaic_0001>

<llo_original>
// kernel: tpu_custom_call.1
$region0: #{tpu_custom_call.1}
  #allocation0 [shape = 'u32[]', space=smem, size = 0x4, offset = 0x4, fixed_abs, tag = 'smem constant byte address 0x4 - core index']
  #allocation1 [shape = 'u32[144,128]{1,0:T(1,128)}', space=vmem, size = 0x12000, scoped, tag = 'internal scratch']
  %s0 = inlined_call_operand.hbm [shape: f32[8,16,16], index: 0, kind: input, shape index: {}]
  %s1 = inlined_call_operand.vmem [shape: f32[8,18,18], index: 1, kind: output, shape index: {}]
  %s2 = sld [smem:[#allocation0]]
  $region89: #{tpu_custom_call.1} parent=0
    _
  %s4 = ssub.s32 1, %s2
  %s5 = scalar_select 0, %s4, %s2
  $region1: #{tpu_custom_call.1} parent=0
    #allocation2 [shape = 'u8[49152]{0}', space=vmem, size = 0xc000, scoped, tag = 'input window, operand 0']
    #allocation3 [shape = 's32[2]{0}', space=sflag, size = 0x8, scoped, tag = 'scoped memory for tpu_custom_call.1']
    #allocation4 [shape = 'u8[73728]{0}', space=vmem, size = 0x12000, scoped, tag = 'output window, operand 0']
    %6 = vsyncpa [#allocation3], 0
    %s7 = scalar_lea.sflag [#allocation3], 1
    %8 = vsyncpa %s7, 0
    loop: start=0, step=1, limit=5
    $region2: #{tpu_custom_call.1} parent=1 // loop_pre_header
      _
    $region3: #{tpu_custom_call.1} parent=1 // loop_header
      %s10 = sphi 0, %s14
      %p11 = scmp.ge.s32.totalorder %s10, 5
      %s20 = sphi 0, %s22
      %s23 = sphi 0, %s20
      %s24 = sphi 0, %s23
      %s40 = sphi 0, %s24
      %s46 = sphi 0, %s48
      %s49 = sphi 0, %s46
      %s50 = sphi 0, %s49
      %s66 = sphi 0, %s50
    $region4: #{tpu_custom_call.1} parent=1 // loop_header_branch
      %13 = sbr.rel (%p11) target = $region8
    $region5: #{tpu_custom_call.1} parent=1 // loop_body
      %s15 = ssub.s32 %s10, 1
      %s16 = ssub.s32 %s10, 2
      %s17 = sadd.s32 %s10, 1
      %s18 = ssub.s32 %s10, %s17
      %p19 = scmp.eq.s32.totalorder %s18, 0
      %s21 = sadd.s32 %s20, 1
      %s22 = scalar_select %p19, %s20, %s21
      %p25 = pneg %p19
      %p26 = scmp.eq.s32.totalorder %s10, 2
      %p27 = por %p25, %p26
      %p28 = scmp.ne.s32.totalorder %s20, %s23
      %p29 = scmp.eq.s32.totalorder %s10, 0
      %p30 = por %p28, %p29
      %p31 = scmp.ne.s32.totalorder %s20, %s23
      %p32 = scmp.eq.s32.totalorder %s15, 2
      %p33 = por %p31, %p32
      %p34 = scmp.ne.s32.totalorder %s23, %s24
      %p35 = scmp.eq.s32.totalorder %s15, 0
      %p36 = por %p34, %p35
      %p37 = scmp.ne.s32.totalorder %s23, %s24
      %p38 = scmp.eq.s32.totalorder %s16, 2
      %p39 = por %p37, %p38
      %p41 = scmp.ne.s32.totalorder %s24, %s40
      %p42 = scmp.eq.s32.totalorder %s16, 0
      %p43 = por %p41, %p42
      %s44 = ssub.s32 %s10, %s17
      %p45 = scmp.eq.s32.totalorder %s44, 0
      %s47 = sadd.s32 %s46, 1
      %s48 = scalar_select %p45, %s46, %s47
      %p51 = pneg %p45
      %p52 = scmp.eq.s32.totalorder %s10, 2
      %p53 = por %p51, %p52
      %p54 = scmp.ne.s32.totalorder %s46, %s49
      %p55 = scmp.eq.s32.totalorder %s10, 0
      %p56 = por %p54, %p55
      %p57 = scmp.ne.s32.totalorder %s46, %s49
      %p58 = scmp.eq.s32.totalorder %s15, 2
      %p59 = por %p57, %p58
      %p60 = scmp.ne.s32.totalorder %s49, %s50
      %p61 = scmp.eq.s32.totalorder %s15, 0
      %p62 = por %p60, %p61
      %p63 = scmp.ne.s32.totalorder %s49, %s50
      %p64 = scmp.eq.s32.totalorder %s16, 2
      %p65 = por %p63, %p64
      %p67 = scmp.ne.s32.totalorder %s50, %s66
      %p68 = scmp.eq.s32.totalorder %s16, 0
      %p69 = por %p67, %p68
      %p70 = scmp.le.s32.totalorder 1, %s10
      %p71 = scmp.lt.s32.totalorder %s10, 4
      %p72 = pnand %p70, %p71
      %p73 = pneg %p72
      // Predicated region
      $region9: #{tpu_custom_call.1} parent=5 // pred_check
        _
      $region10: #{tpu_custom_call.1} parent=5 // pred_check_branch
        %75 = sbr.rel (%p72) target = $region12
      $region11: #{tpu_custom_call.1} parent=5 // pred_region
        %s76 = ssub.s32 %s10, 1
      $region12: #{tpu_custom_call.1} parent=5 // pred_fallthru
        _
      %p77 = scmp.lt.s32.totalorder %s10, 3
      // Predicated region
      $region13: #{tpu_custom_call.1} parent=5 // pred_check
        %p78 = pneg %p77
      $region14: #{tpu_custom_call.1} parent=5 // pred_check_branch
        %80 = sbr.rel (%p78) target = $region16
      $region15: #{tpu_custom_call.1} parent=5 // pred_region
        // Predicated region
        $region17: #{tpu_custom_call.1} parent=15 // pred_check
          %p81 = pneg %p30
        $region18: #{tpu_custom_call.1} parent=15 // pred_check_branch
          %83 = sbr.rel (%p81) target = $region20
        $region19: #{tpu_custom_call.1} parent=15 // pred_region
          %s84 = sand.u32 %s20, 1
          %s85 = scalar_lea.sflag [#allocation3], %s84
          %s86 = sand.u32 %s20, 1
          %s87 = smul.addr %s86, 48
          %s88 = scalar_lea.vmem [#allocation2], %s87
          %s89 = smul.u32 3, %s10
          %s90 = ssub.s32 8, %s89
          %p91 = scmp.lt.s32.totalorder %s90, 3
          %s92 = scalar_select %p91, %s90, 3
          %s93 = smul.u32 128, %s92
          %s94 = smul.u32 %s93, 2
          %s96 = ssub.s32 768, %s94
          %97 = vsyncadd %s85, %s96
          %p98 = scmp.ne.s32.totalorder 0, %s94
          %s99 = smul.addr %s89, 2
          %s100 = smul.addr %s99, 128
          %s101 = scalar_lea.hbm %s0, %s100
          %s102 = smul.u32 %s92, 2
          %s103 = smul.u32 8, %s102
          %s104 = sshll.u32 %s88, 4
          %s105 = int_to_ptr.vmem [resolvable:$true] %s104
          %s106 = sshll.u32 %s103, 4
          %110 = dma.hbm_to_vmem [thread:$0]  (%p98), %s101, %s106, %s105, %s85, 128, 128, 8
        $region20: #{tpu_custom_call.1} parent=15 // pred_fallthru
          _
      $region16: #{tpu_custom_call.1} parent=5 // pred_fallthru
        _
      %p111 = scmp.le.s32.totalorder 1, %s10
      %p112 = scmp.lt.s32.totalorder %s10, 4
      %p113 = pnand %p111, %p112
      %p114 = pneg %p113
      // Predicated region
      $region21: #{tpu_custom_call.1} parent=5 // pred_check
        _
      $region22: #{tpu_custom_call.1} parent=5 // pred_check_branch
        %116 = sbr.rel (%p113) target = $region24
      $region23: #{tpu_custom_call.1} parent=5 // pred_region
        %s117 = ssub.s32 %s10, 1
        %s118 = sand.u32 %s23, 1
        %s119 = scalar_lea.sflag [#allocation3], %s118
        %s120 = sand.u32 %s23, 1
        %s121 = smul.addr %s120, 48
        %s122 = scalar_lea.vmem [#allocation2], %s121
        // Predicated region
        $region25: #{tpu_custom_call.1} parent=23 // pred_check
          %p123 = pneg %p36
        $region26: #{tpu_custom_call.1} parent=23 // pred_check_branch
          %125 = sbr.rel (%p123) target = $region28
        $region27: #{tpu_custom_call.1} parent=23 // pred_region
          %126 = dma.done %s119, 768
        $region28: #{tpu_custom_call.1} parent=23 // pred_fallthru
          _
        %s127 = sand.u32 %s23, 1
        %s128 = scalar_lea.sflag [#allocation3], %s127
        %s129 = sand.u32 %s23, 1
        %s130 = smul.addr %s129, 48
        %s131 = scalar_lea.vmem [#allocation2], %s130
        %p132 = pneg %p36
        %p133 = pneg %p33
        %p134 = pneg %p62
        %p135 = pneg %p59
        %s136 = sand.u32 %s49, 1
        %s137 = sand.u32 %s49, 1
        %s138 = smul.addr %s137, 72
        %s139 = scalar_lea.vmem [#allocation4], %s138
        %s140 = smul.u32 3, %s15
        %s141 = ssub.s32 8, %s140
        %p142 = scmp.lt.s32.totalorder %s141, 3
        %s143 = scalar_select %p142, %s141, 3
        %s144 = smul.u32 128, %s143
        %s145 = smul.u32 %s144, 2
        %s146 = smul.u32 3, %s15
        %s147 = ssub.s32 8, %s146
        %p148 = scmp.lt.s32.totalorder %s147, 3
        %s149 = scalar_select %p148, %s147, 3
        %s150 = smul.u32 128, %s149
        %s151 = smul.u32 %s150, 3
        %vm152 = vcmask 139264
        %153 = vst.msk [vmem:[%s139] sm:$0x1] %vm152, 0.0
        %154 = vst.msk [vmem:[%s139 + $0x18] sm:$0x1] %vm152, 0.0
        %155 = vst.msk [vmem:[%s139 + $0x30] sm:$0x1] %vm152, 0.0
        %156 = vst.msk [vmem:[%s139 + $0x11] sm:$0x1] %vm152, 0.0
        %157 = vst.msk [vmem:[%s139 + $0x29] sm:$0x1] %vm152, 0.0
        %158 = vst.msk [vmem:[%s139 + $0x41] sm:$0x1] %vm152, 0.0
        %vm159 = vcmask 7168
        %160 = vst.msk [vmem:[%s139 + $0x1] sm:$0xff] %vm159, 0.0
        %161 = vst.msk [vmem:[%s139 + $0x9] sm:$0xff] %vm159, 0.0
        %162 = vst.msk [vmem:[%s139 + $0x19] sm:$0xff] %vm159, 0.0
        %163 = vst.msk [vmem:[%s139 + $0x21] sm:$0xff] %vm159, 0.0
        %164 = vst.msk [vmem:[%s139 + $0x31] sm:$0xff] %vm159, 0.0
        %165 = vst.msk [vmem:[%s139 + $0x39] sm:$0xff] %vm159, 0.0
        %vm166 = vcmask 146568
        %167 = vst.msk [vmem:[%s139 + $0x1] sm:$0xff] %vm166, 0.0
        %168 = vst.msk [vmem:[%s139 + $0x9] sm:$0xff] %vm166, 0.0
        %169 = vst.msk [vmem:[%s139 + $0x19] sm:$0xff] %vm166, 0.0
        %170 = vst.msk [vmem:[%s139 + $0x21] sm:$0xff] %vm166, 0.0
        %171 = vst.msk [vmem:[%s139 + $0x31] sm:$0xff] %vm166, 0.0
        %172 = vst.msk [vmem:[%s139 + $0x39] sm:$0xff] %vm166, 0.0
        %v173 = vld [vmem:[%s122] sm:$0xff]
        %v174 = vld [vmem:[%s122 + $0x8] sm:$0xff]
        %v175 = vld [vmem:[%s122 + $0x10] sm:$0xff]
        %v176 = vld [vmem:[%s122 + $0x18] sm:$0xff]
        %v177 = vld [vmem:[%s122 + $0x20] sm:$0xff]
        %v178 = vld [vmem:[%s122 + $0x28] sm:$0xff]
        %185 = vrot.lane.b32.xlu0 %v173, 1
        %v186 = vpop.permute.xlu0 %185
        %187 = vrot.lane.b32.xlu0 %v174, 1
        %v188 = vpop.permute.xlu0 %187
        %189 = vrot.lane.b32.xlu0 %v175, 1
        %v190 = vpop.permute.xlu0 %189
        %191 = vrot.lane.b32.xlu0 %v176, 1
        %v192 = vpop.permute.xlu0 %191
        %193 = vrot.lane.b32.xlu0 %v177, 1
        %v194 = vpop.permute.xlu0 %193
        %195 = vrot.lane.b32.xlu0 %v178, 1
        %v196 = vpop.permute.xlu0 %195
        %vm203 = vcmask 138248
        %204 = vst.msk [vmem:[%s139 + $0x1] sm:$0xff] %vm203, %v186
        %205 = vst.msk [vmem:[%s139 + $0x9] sm:$0xff] %vm203, %v188
        %206 = vst.msk [vmem:[%s139 + $0x19] sm:$0xff] %vm203, %v190
        %207 = vst.msk [vmem:[%s139 + $0x21] sm:$0xff] %vm203, %v192
        %208 = vst.msk [vmem:[%s139 + $0x31] sm:$0xff] %vm203, %v194
        %209 = vst.msk [vmem:[%s139 + $0x39] sm:$0xff] %vm203, %v196
        %s210 = sand.u32 %s49, 1
        %s211 = sand.u32 %s49, 1
        %s212 = smul.addr %s211, 72
        %s213 = scalar_lea.vmem [#allocation4], %s212
        // Predicated region
        $region29: #{tpu_custom_call.1} parent=23 // pred_check
          %p214 = pneg %p59
        $region30: #{tpu_custom_call.1} parent=23 // pred_check_branch
          %216 = sbr.rel (%p214) target = $region32
        $region31: #{tpu_custom_call.1} parent=23 // pred_region
          %s217 = smul.u32 3, %s15
          %s218 = ssub.s32 8, %s217
          %p219 = scmp.lt.s32.totalorder %s218, 3
          %s220 = scalar_select %p219, %s218, 3
          %s221 = smul.u32 128, %s220
          %s222 = smul.u32 %s221, 3
          %p223 = scmp.ne.s32.totalorder 0, %s222
          %s224 = smul.addr %s217, 3
          %s225 = smul.addr %s224, 8
          %s226 = scalar_lea.vmem %s1, %s225
          %s227 = smul.u32 %s220, 3
          // Predicated region
          $region33: #{tpu_custom_call.1} parent=31 // pred_check
            %p228 = pneg %p223
          $region34: #{tpu_custom_call.1} parent=31 // pred_check_branch
            %230 = sbr.rel (%p228) target = $region36
          $region35: #{tpu_custom_call.1} parent=31 // pred_region
            // Predicated region
            $region37: #{tpu_custom_call.1} parent=35 // pred_check
              _
            $region38: #{tpu_custom_call.1} parent=35 // pred_check_branch
              %232 = sbr.rel (0) target = $region40
            $region39: #{tpu_custom_call.1} parent=35 // pred_region
              // Predicated region
              $region59: #{tpu_custom_call.1} parent=39 // pred_check
                _
              $region60: #{tpu_custom_call.1} parent=39 // pred_check_branch
                %298 = sbr.rel (0) target = $region62
              $region61: #{tpu_custom_call.1} parent=39 // pred_region
                %s299 = sdiv.u32.pop %s227, 9
                %s300 = srem.u32.pop %s227, 9
                // While loop
                $region63: #{tpu_custom_call.1} parent=61 // loop_pre_header
                  _
                $region64: #{tpu_custom_call.1} parent=61 // loop_header
                  %s302 = sphi 0, %s304
                  %p303 = scmp.ge.s32.totalorder %s302, %s299
                  %s307 = sphi 0, %s330
                  %s308 = sphi %s213, %s333
                  %s309 = sphi %s226, %s334
                $region65: #{tpu_custom_call.1} parent=61 // loop_header_branch
                  %306 = sbr.rel (%p303) target = $region69
                $region66: #{tpu_custom_call.1} parent=61 // loop_body
                  %v310 = vld [vmem:[%s308] sm:$0xff]
                  %311 = vst [vmem:[%s309] sm:$0xff] %v310
                  %v312 = vld [vmem:[%s308 + $0x8] sm:$0xff]
                  %313 = vst [vmem:[%s309 + $0x8] sm:$0xff] %v312
                  %v314 = vld [vmem:[%s308 + $0x10] sm:$0xff]
                  %315 = vst [vmem:[%s309 + $0x10] sm:$0xff] %v314
                  %v316 = vld [vmem:[%s308 + $0x18] sm:$0xff]
                  %317 = vst [vmem:[%s309 + $0x18] sm:$0xff] %v316
                  %v318 = vld [vmem:[%s308 + $0x20] sm:$0xff]
                  %319 = vst [vmem:[%s309 + $0x20] sm:$0xff] %v318
                  %v320 = vld [vmem:[%s308 + $0x28] sm:$0xff]
                  %321 = vst [vmem:[%s309 + $0x28] sm:$0xff] %v320
                  %v322 = vld [vmem:[%s308 + $0x30] sm:$0xff]
                  %323 = vst [vmem:[%s309 + $0x30] sm:$0xff] %v322
                  %v324 = vld [vmem:[%s308 + $0x38] sm:$0xff]
                  %325 = vst [vmem:[%s309 + $0x38] sm:$0xff] %v324
                  %v326 = vld [vmem:[%s308 + $0x40] sm:$0xff]
                  %327 = vst [vmem:[%s309 + $0x40] sm:$0xff] %v326
                  %s328 = sadd.s32 1, %s307
                  %p329 = scmp.ge.s32.totalorder %s328, %s299
                  %s330 = scalar_select %p329, 0, %s328
                  %s331 = smul.u32 %s330, 72
                  %s332 = smul.u32 %s330, 72
                  %s333 = scalar_lea.vmem %s213, %s331 [#allocation4]
                  %s334 = scalar_lea.vmem %s226, %s332
                $region67: #{tpu_custom_call.1} parent=61 // loop_footer
                  %s304 = sadd.s32 %s302, 1
                $region68: #{tpu_custom_call.1} parent=61 // loop_footer_branch
                  %301 = sbr.rel target = $region64
                $region69: #{tpu_custom_call.1} parent=61 // loop_exit
                  _
                %s335 = sdiv.u32.pop %s227, 9
                %s336 = srem.u32.pop %s227, 9
                %s337 = smul.u32 %s335, 9
                %s338 = smul.u32 8, %s337
                %s339 = scalar_lea.vmem %s213, %s338 [#allocation4]
                %s340 = smul.u32 8, %s337
                %s341 = scalar_lea.vmem %s226, %s340
                // While loop
                $region70: #{tpu_custom_call.1} parent=61 // loop_pre_header
                  _
                $region71: #{tpu_custom_call.1} parent=61 // loop_header
                  %s343 = sphi 0, %s345
                  %p344 = scmp.ge.s32.totalorder %s343, %s336
                  %s348 = sphi 0, %s355
                  %s349 = sphi %s339, %s358
                  %s350 = sphi %s341, %s359
                $region72: #{tpu_custom_call.1} parent=61 // loop_header_branch
                  %347 = sbr.rel (%p344) target = $region76
                $region73: #{tpu_custom_call.1} parent=61 // loop_body
                  %v351 = vld [vmem:[%s349] sm:$0xff]
                  %352 = vst [vmem:[%s350] sm:$0xff] %v351
                  %s353 = sadd.s32 1, %s348
                  %p354 = scmp.ge.s32.totalorder %s353, %s336
                  %s355 = scalar_select %p354, 0, %s353
                  %s356 = smul.u32 %s355, 8
                  %s357 = smul.u32 %s355, 8
                  %s358 = scalar_lea.vmem %s339, %s356 [#allocation4]
                  %s359 = scalar_lea.vmem %s341, %s357
                $region74: #{tpu_custom_call.1} parent=61 // loop_footer
                  %s345 = sadd.s32 %s343, 1
                $region75: #{tpu_custom_call.1} parent=61 // loop_footer_branch
                  %342 = sbr.rel target = $region71
                $region76: #{tpu_custom_call.1} parent=61 // loop_exit
                  _
              $region62: #{tpu_custom_call.1} parent=39 // pred_fallthru
                _
              // Predicated region
              $region77: #{tpu_custom_call.1} parent=39 // pred_check
                _
              $region78: #{tpu_custom_call.1} parent=39 // pred_check_branch
                %361 = sbr.rel target = $region80
              $region79: #{tpu_custom_call.1} parent=39 // pred_region
                _
              $region80: #{tpu_custom_call.1} parent=39 // pred_fallthru
                _
            $region40: #{tpu_custom_call.1} parent=35 // pred_fallthru
              _
            // Predicated region
            $region41: #{tpu_custom_call.1} parent=35 // pred_check
              _
            $region42: #{tpu_custom_call.1} parent=35 // pred_check_branch
              %234 = sbr.rel target = $region44
            $region43: #{tpu_custom_call.1} parent=35 // pred_region
              %s236 = sdiv.u32.pop %s227, 9
              %s237 = srem.u32.pop %s227, 9
              // While loop
              $region45: #{tpu_custom_call.1} parent=43 // loop_pre_header
                _
              $region46: #{tpu_custom_call.1} parent=43 // loop_header
                %s239 = sphi 0, %s241
                %p240 = scmp.ge.s32.totalorder %s239, %s236
                %s244 = sphi 0, %s267
                %s245 = sphi %s213, %s270
                %s246 = sphi %s226, %s271
              $region47: #{tpu_custom_call.1} parent=43 // loop_header_branch
                %243 = sbr.rel (%p240) target = $region51
              $region48: #{tpu_custom_call.1} parent=43 // loop_body
                %v247 = vld [vmem:[%s245] sm:$0xff]
                %248 = vst [vmem:[%s246] sm:$0xff] %v247
                %v249 = vld [vmem:[%s245 + $0x8] sm:$0xff]
                %250 = vst [vmem:[%s246 + $0x8] sm:$0xff] %v249
                %v251 = vld [vmem:[%s245 + $0x10] sm:$0xff]
                %252 = vst [vmem:[%s246 + $0x10] sm:$0xff] %v251
                %v253 = vld [vmem:[%s245 + $0x18] sm:$0xff]
                %254 = vst [vmem:[%s246 + $0x18] sm:$0xff] %v253
                %v255 = vld [vmem:[%s245 + $0x20] sm:$0xff]
                %256 = vst [vmem:[%s246 + $0x20] sm:$0xff] %v255
                %v257 = vld [vmem:[%s245 + $0x28] sm:$0xff]
                %258 = vst [vmem:[%s246 + $0x28] sm:$0xff] %v257
                %v259 = vld [vmem:[%s245 + $0x30] sm:$0xff]
                %260 = vst [vmem:[%s246 + $0x30] sm:$0xff] %v259
                %v261 = vld [vmem:[%s245 + $0x38] sm:$0xff]
                %262 = vst [vmem:[%s246 + $0x38] sm:$0xff] %v261
                %v263 = vld [vmem:[%s245 + $0x40] sm:$0xff]
                %264 = vst [vmem:[%s246 + $0x40] sm:$0xff] %v263
                %s265 = sadd.s32 1, %s244
                %p266 = scmp.ge.s32.totalorder %s265, %s236
                %s267 = scalar_select %p266, 0, %s265
                %s268 = smul.u32 %s267, 72
                %s269 = smul.u32 %s267, 72
                %s270 = scalar_lea.vmem %s213, %s268 [#allocation4]
                %s271 = scalar_lea.vmem %s226, %s269
              $region49: #{tpu_custom_call.1} parent=43 // loop_footer
                %s241 = sadd.s32 %s239, 1
              $region50: #{tpu_custom_call.1} parent=43 // loop_footer_branch
                %238 = sbr.rel target = $region46
              $region51: #{tpu_custom_call.1} parent=43 // loop_exit
                _
              %s272 = sdiv.u32.pop %s227, 9
              %s273 = srem.u32.pop %s227, 9
              %s274 = smul.u32 %s272, 9
              %s275 = smul.u32 8, %s274
              %s276 = scalar_lea.vmem %s213, %s275 [#allocation4]
              %s277 = smul.u32 8, %s274
              %s278 = scalar_lea.vmem %s226, %s277
              // While loop
              $region52: #{tpu_custom_call.1} parent=43 // loop_pre_header
                _
              $region53: #{tpu_custom_call.1} parent=43 // loop_header
                %s280 = sphi 0, %s282
                %p281 = scmp.ge.s32.totalorder %s280, %s273
                %s285 = sphi 0, %s292
                %s286 = sphi %s276, %s295
                %s287 = sphi %s278, %s296
              $region54: #{tpu_custom_call.1} parent=43 // loop_header_branch
                %284 = sbr.rel (%p281) target = $region58
              $region55: #{tpu_custom_call.1} parent=43 // loop_body
                %v288 = vld [vmem:[%s286] sm:$0xff]
                %289 = vst [vmem:[%s287] sm:$0xff] %v288
                %s290 = sadd.s32 1, %s285
                %p291 = scmp.ge.s32.totalorder %s290, %s273
                %s292 = scalar_select %p291, 0, %s290
                %s293 = smul.u32 %s292, 8
                %s294 = smul.u32 %s292, 8
                %s295 = scalar_lea.vmem %s276, %s293 [#allocation4]
                %s296 = scalar_lea.vmem %s278, %s294
              $region56: #{tpu_custom_call.1} parent=43 // loop_footer
                %s282 = sadd.s32 %s280, 1
              $region57: #{tpu_custom_call.1} parent=43 // loop_footer_branch
                %279 = sbr.rel target = $region53
              $region58: #{tpu_custom_call.1} parent=43 // loop_exit
                _
            $region44: #{tpu_custom_call.1} parent=35 // pred_fallthru
              _
          $region36: #{tpu_custom_call.1} parent=31 // pred_fallthru
            _
          %362 = vnop
        $region32: #{tpu_custom_call.1} parent=23 // pred_fallthru
          _
      $region24: #{tpu_custom_call.1} parent=5 // pred_fallthru
        _
      %p363 = scmp.le.s32.totalorder 2, %s10
      // Predicated region
      $region81: #{tpu_custom_call.1} parent=5 // pred_check
        %p364 = pneg %p363
      $region82: #{tpu_custom_call.1} parent=5 // pred_check_branch
        %366 = sbr.rel (%p364) target = $region84
      $region83: #{tpu_custom_call.1} parent=5 // pred_region
        %s367 = ssub.s32 %s10, 2
        // Predicated region
        $region85: #{tpu_custom_call.1} parent=83 // pred_check
          %p368 = pneg %p65
        $region86: #{tpu_custom_call.1} parent=83 // pred_check_branch
          %370 = sbr.rel (%p368) target = $region88
        $region87: #{tpu_custom_call.1} parent=83 // pred_region
          %s371 = sand.u32 %s50, 1
          %s372 = sand.u32 %s50, 1
          %s373 = smul.addr %s372, 72
          %s374 = scalar_lea.vmem [#allocation4], %s373
        $region88: #{tpu_custom_call.1} parent=83 // pred_fallthru
          _
      $region84: #{tpu_custom_call.1} parent=5 // pred_fallthru
        _
    $region6: #{tpu_custom_call.1} parent=1 // loop_footer
      %s14 = sadd.s32 1, %s10
    $region7: #{tpu_custom_call.1} parent=1 // loop_footer_branch
      %9 = sbr.rel target = $region3
    $region8: #{tpu_custom_call.1} parent=1 // loop_exit
      _
    %375 = vsyncpa [#allocation3], 1
    %s376 = scalar_lea.sflag [#allocation3], 1
    %377 = vsyncpa %s376, 1

</llo_original>
